<compile_context>
chip_gen: v6e
topology: v6e:2x2x1
jax: 0.10.0
libtpu: 0.0.40
codegen_flags: <defaults>
</compile_context>

<pallas_src>
import jax
import jax.numpy as jnp
from jax.experimental import pallas as pl
from jax.experimental.pallas import tpu as pltpu


def _split_kernel_lane(x_ref, even_ref, odd_ref):
    # x_ref: (ts, 2*D) — each row is [even_row, odd_row] concatenated in lanes.
    # Slice the Ref directly: 1 vld + 1 vst per vreg, no full-tile value temp.
    d = even_ref.shape[-1]
    even_ref[...] = x_ref[:, :d]
    odd_ref[...] = x_ref[:, d:]


def _split_kernel_dma(xe_ref, xo_ref, even_ref, odd_ref):
    # D % 128 == 0 path: the lane split already happened in the input DMAs.
    even_ref[...] = xe_ref[...]
    odd_ref[...] = xo_ref[...]


def _round_down(n, m):
    return (n // m) * m


def _lane_pad(n):
    return -(-n // 128) * 128


def _choose_seq_tile(half, d, itemsize, vmem_budget_bytes, batch, min_total_steps=8):
    """Rows of the (B, half, 2D) view processed per grid step."""
    # Sublane packing of the dtype: f32 -> 8, bf16 -> 16, int8/fp8 -> 32.
    sub = 8 * max(1, 4 // itemsize)

    # Double-buffered, lane-padded VMEM bytes per row: in(2D) + even(D) + odd(D).
    bytes_per_row = 2 * (_lane_pad(2 * d) + 2 * _lane_pad(d)) * itemsize
    ts_budget = max(sub, _round_down(vmem_budget_bytes // max(bytes_per_row, 1), sub))

    # Guarantee enough grid steps for v7x megacore sharding + pipeline amortization.
    min_seq_tiles = -(-min_total_steps // max(batch, 1))
    if batch == 1:
        min_seq_tiles = max(min_seq_tiles, 2)
    min_seq_tiles = max(1, min(min_seq_tiles, half // sub))
    ts_steps = max(sub, _round_down(half // min_seq_tiles, sub))

    ts = min(ts_budget, ts_steps, half)
    if ts >= half:
        return half
    ts = max(sub, _round_down(ts, sub))

    # Prefer a tile that divides `half` (no ragged, masked last tile), but only
    # trade away a bounded amount of tile size for it.
    lo = max(sub, _round_down(ts * 3 // 4, sub))
    for cand in range(ts, lo - 1, -sub):
        if half % cand == 0:
            return cand
    return ts


def splitting(x, *, vmem_budget_bytes=32 << 20):
    """Returns (even, odd) = (x[:, ::2, :], x[:, 1::2, :])."""
    B, T, D = x.shape
    assert T % 2 == 0, "sequence length must be even for this kernel"
    half = T // 2
    itemsize = jnp.dtype(x.dtype).itemsize

    # Free contiguous view: x2[b, s] = concat(x[b, 2s], x[b, 2s+1]) along lanes.
    x2 = x.reshape(B, half, 2 * D)

    # Cap the footprint so we always stay well under v7x's 64 MiB per-TC VMEM.
    budget = min(int(vmem_budget_bytes), 44 << 20)
    ts = _choose_seq_tile(half, D, itemsize, budget, B)
    grid = (B, pl.cdiv(half, ts))

    # Tie the scoped-VMEM limit to the actual double-buffered tile footprint.
    footprint = 2 * (_lane_pad(2 * D) + 2 * _lane_pad(D)) * itemsize * ts
    vmem_limit = int(min(48 << 20, max(4 << 20, footprint * 5 // 4 + (1 << 20))))

    out_shapes = (
        jax.ShapeDtypeStruct((B, half, D), x.dtype),
        jax.ShapeDtypeStruct((B, half, D), x.dtype),
    )
    out_specs = [
        pl.BlockSpec((pl.Squeezed(), ts, D), lambda b, s: (b, s, 0)),
        pl.BlockSpec((pl.Squeezed(), ts, D), lambda b, s: (b, s, 0)),
    ]

    if D % 128 == 0:
        # DMA does the split: two aliased inputs, lane-block 0 (even) / 1 (odd).
        kernel = _split_kernel_dma
        in_specs = [
            pl.BlockSpec((pl.Squeezed(), ts, D), lambda b, s: (b, s, 0)),
            pl.BlockSpec((pl.Squeezed(), ts, D), lambda b, s: (b, s, 1)),
        ]
        operands = (x2, x2)
    else:
        # General D: one dense (ts, 2D) read, split via Ref slices in the body.
        # For D < 128 the outputs are lane-sparse (masked stores) — pad features
        # to a multiple of 128 upstream if this op becomes throughput-critical.
        kernel = _split_kernel_lane
        in_specs = [pl.BlockSpec((pl.Squeezed(), ts, 2 * D), lambda b, s: (b, s, 0))]
        operands = (x2,)

    return pl.pallas_call(
        kernel,
        out_shape=out_shapes,
        grid_spec=pltpu.PrefetchScalarGridSpec(
            num_scalar_prefetch=0,
            grid=grid,
            in_specs=in_specs,
            out_specs=out_specs,
        ),
        compiler_params=pltpu.CompilerParams(
            dimension_semantics=("parallel", "parallel"),
            vmem_limit_bytes=vmem_limit,
        ),
        cost_estimate=pl.CostEstimate(
            flops=0,
            transcendentals=0,
            bytes_accessed=2 * B * T * D * itemsize,  # read once + write once
        ),
    )(*operands)


if __name__ == "__main__":
    # 1) Small smoke shape consistent with the module's (batch, seq, feature)
    #    layout; D=32 < 128 exercises the general-D (ref-slice) path.
    B, T, D = 2, 8, 32
    x = jax.random.normal(jax.random.PRNGKey(0), (B, T, D), dtype=jnp.float32)
    even, odd = splitting(x)
    jax.block_until_ready((even, odd))
    assert even.shape == (B, T // 2, D) and odd.shape == (B, T // 2, D)
    assert jnp.array_equal(even, x[:, ::2, :])
    assert jnp.array_equal(odd, x[:, 1::2, :])

    # 2) D % 128 == 0 exercises the DMA-split path with a tiled sequence grid
    #    (small budget forces ts=32 -> grid=(2, 4)).
    B2, T2, D2 = 2, 256, 256
    xb = jax.random.normal(jax.random.PRNGKey(1), (B2, T2, D2), dtype=jnp.float32)
    even2, odd2 = splitting(xb, vmem_budget_bytes=256 * 1024)
    jax.block_until_ready((even2, odd2))
    assert jnp.array_equal(even2, xb[:, ::2, :])
    assert jnp.array_equal(odd2, xb[:, 1::2, :])

    # 3) bf16, B=1 (forces >=2 seq tiles for megacore), ragged last tile
    #    (half=24, ts=16) exercises dtype-aware sublane packing + edge masking.
    B3, T3, D3 = 1, 48, 128
    xc = jax.random.normal(jax.random.PRNGKey(2), (B3, T3, D3), dtype=jnp.float32)
    xc = xc.astype(jnp.bfloat16)
    even3, odd3 = splitting(xc)
    jax.block_until_ready((even3, odd3))
    assert jnp.array_equal(even3, xc[:, ::2, :])
    assert jnp.array_equal(odd3, xc[:, 1::2, :])

    print("KERNEL_OK")
</pallas_src>

<mosaic_0001>
module attributes {stable_mosaic.version = 11 : i64} {
  func.func @_split_kernel_lane(%arg0: i32, %arg1: i32, %arg2: memref<1x4x64xf32, #tpu.memory_space<vmem>>, %arg3: memref<1x4x32xf32, #tpu.memory_space<vmem>>, %arg4: memref<1x4x32xf32, #tpu.memory_space<vmem>>) attributes {dimension_semantics = [#tpu.dimension_semantics<parallel>, #tpu.dimension_semantics<parallel>], iteration_bounds = array<i64: 2, 1>, scalar_prefetch = 0 : i64, scratch_operands = 0 : i64, tpu.core_type = #tpu.core_type<tc>, window_params = [{transform_indices = @transform_0, window_bounds = array<i64: 1, 4, 64>}, {transform_indices = @transform_1, window_bounds = array<i64: 1, 4, 32>}, {transform_indices = @transform_2, window_bounds = array<i64: 1, 4, 32>}]} {
    %c0 = arith.constant 0 : index
    %c0_0 = arith.constant 0 : index
    %c0_1 = arith.constant 0 : index
    %0 = vector.load %arg2[%c0, %c0_0, %c0_1] : memref<1x4x64xf32, #tpu.memory_space<vmem>>, vector<1x4x32xf32>
    %1 = vector.shape_cast %0 : vector<1x4x32xf32> to vector<4x32xf32>
    %c0_2 = arith.constant 0 : index
    %c0_3 = arith.constant 0 : index
    %c0_4 = arith.constant 0 : index
    %2 = vector.load %arg3[%c0_2, %c0_3, %c0_4] : memref<1x4x32xf32, #tpu.memory_space<vmem>>, vector<1x4x32xf32>
    %3 = vector.shape_cast %2 : vector<1x4x32xf32> to vector<4x32xf32>
    %4 = vector.shape_cast %1 : vector<4x32xf32> to vector<1x4x32xf32>
    tpu.vector_store %arg3[%c0_2, %c0_3, %c0_4], %4 {strides = array<i32>} : memref<1x4x32xf32, #tpu.memory_space<vmem>>, vector<1x4x32xf32>,
    %c0_5 = arith.constant 0 : index
    %c0_6 = arith.constant 0 : index
    %c32 = arith.constant 32 : index
    %5 = vector.load %arg2[%c0_5, %c0_6, %c32] : memref<1x4x64xf32, #tpu.memory_space<vmem>>, vector<1x4x32xf32>
    %6 = vector.shape_cast %5 : vector<1x4x32xf32> to vector<4x32xf32>
    %c0_7 = arith.constant 0 : index
    %c0_8 = arith.constant 0 : index
    %c0_9 = arith.constant 0 : index
    %7 = vector.load %arg4[%c0_7, %c0_8, %c0_9] : memref<1x4x32xf32, #tpu.memory_space<vmem>>, vector<1x4x32xf32>
    %8 = vector.shape_cast %7 : vector<1x4x32xf32> to vector<4x32xf32>
    %9 = vector.shape_cast %6 : vector<4x32xf32> to vector<1x4x32xf32>
    tpu.vector_store %arg4[%c0_7, %c0_8, %c0_9], %9 {strides = array<i32>} : memref<1x4x32xf32, #tpu.memory_space<vmem>>, vector<1x4x32xf32>,
    return
  }
  func.func @transform_0(%arg0: i32, %arg1: i32) -> (i32, i32, i32) {
    %c0_i32 = arith.constant 0 : i32
    %c0_i32_0 = arith.constant 0 : i32
    return %arg0, %arg1, %c0_i32 : i32, i32, i32
  }
  func.func @transform_1(%arg0: i32, %arg1: i32) -> (i32, i32, i32) {
    %c0_i32 = arith.constant 0 : i32
    %c0_i32_0 = arith.constant 0 : i32
    return %arg0, %arg1, %c0_i32 : i32, i32, i32
  }
  func.func @transform_2(%arg0: i32, %arg1: i32) -> (i32, i32, i32) {
    %c0_i32 = arith.constant 0 : i32
    %c0_i32_0 = arith.constant 0 : i32
    return %arg0, %arg1, %c0_i32 : i32, i32, i32
  }
}

</mosaic_0001>

<llo_original>
// kernel: tpu_custom_call.1
$region0: #{tpu_custom_call.1}
  #allocation0 [shape = 'u32[]', space=smem, size = 0x4, offset = 0x4, fixed_abs, tag = 'smem constant byte address 0x4 - core index']
  #allocation1 [shape = 'u32[144,128]{1,0:T(1,128)}', space=vmem, size = 0x12000, scoped, tag = 'internal scratch']
  %s0 = inlined_call_operand.hbm [shape: f32[2,4,64], index: 0, kind: input, shape index: {}]
  %s1 = inlined_call_operand.hbm [shape: f32[2,4,32], index: 1, kind: output, shape index: {0}]
  %s2 = inlined_call_operand.hbm [shape: f32[2,4,32], index: 2, kind: output, shape index: {1}]
  %3 = xla_tuple %s1, %s2
  %s4 = sld [smem:[#allocation0]]
  $region49: #{tpu_custom_call.1} parent=0
    _
  %s6 = ssub.s32 1, %s4
  %s7 = scalar_select 0, %s6, %s4
  $region1: #{tpu_custom_call.1} parent=0
    #allocation2 [shape = 'u8[4096]{0}', space=vmem, size = 0x1000, scoped, tag = 'input window, operand 0']
    #allocation3 [shape = 's32[2]{0}', space=sflag, size = 0x8, scoped, tag = 'scoped memory for tpu_custom_call.1']
    #allocation4 [shape = 's32[2]{0}', space=sflag, size = 0x8, scoped, tag = 'scoped memory for tpu_custom_call.1']
    #allocation5 [shape = 'u8[4096]{0}', space=vmem, size = 0x1000, scoped, tag = 'output window, operand 0']
    #allocation6 [shape = 'u8[4096]{0}', space=vmem, size = 0x1000, scoped, tag = 'output window, operand 1']
    #allocation7 [shape = 's32[2]{0}', space=sflag, size = 0x8, scoped, tag = 'scoped memory for tpu_custom_call.1']
    %8 = vsyncpa [#allocation3], 0
    %s9 = scalar_lea.sflag [#allocation3], 1
    %10 = vsyncpa %s9, 0
    %11 = vsyncpa [#allocation4], 0
    %s12 = scalar_lea.sflag [#allocation4], 1
    %13 = vsyncpa %s12, 0
    %14 = vsyncpa [#allocation7], 0
    %s15 = scalar_lea.sflag [#allocation7], 1
    %16 = vsyncpa %s15, 0
    loop: start=0, step=1, limit=4
    $region2: #{tpu_custom_call.1} parent=1 // loop_pre_header
      _
    $region3: #{tpu_custom_call.1} parent=1 // loop_header
      %s18 = sphi 0, %s22
      %p19 = scmp.ge.s32.totalorder %s18, 4
      %s25 = sphi 0, %s37
      %s26 = sphi 0, %s33
      %s27 = sphi 0, %s25
      %s28 = sphi 0, %s26
      %s29 = sphi 0, %s27
      %s30 = sphi 0, %s28
      %s42 = sphi 0, %s44
      %s45 = sphi 0, %s42
      %s46 = sphi 0, %s45
      %s62 = sphi 0, %s46
      %s70 = sphi 0, %s72
      %s73 = sphi 0, %s70
      %s74 = sphi 0, %s73
      %s90 = sphi 0, %s74
      %s98 = sphi 0, %s100
      %s101 = sphi 0, %s98
      %s102 = sphi 0, %s101
      %s118 = sphi 0, %s102
    $region4: #{tpu_custom_call.1} parent=1 // loop_header_branch
      %21 = sbr.rel (%p19) target = $region8
    $region5: #{tpu_custom_call.1} parent=1 // loop_body
      %s23 = ssub.s32 %s18, 1
      %s24 = ssub.s32 %s18, 2
      %s31 = sadd.s32 1, %s26
      %p32 = scmp.ge.s32.totalorder %s31, 1
      %s33 = scalar_select %p32, 0, %s31
      %s34 = sadd.s32 1, %s25
      %s35 = scalar_select %p32, %s34, %s25
      %p36 = scmp.ge.s32.totalorder %s35, 2
      %s37 = scalar_select %p36, 0, %s35
      %s38 = ssub.s32 %s25, %s37
      %s39 = ssub.s32 %s26, %s33
      %s40 = sor.u32 %s38, %s39
      %p41 = scmp.eq.s32.totalorder %s40, 0
      %s43 = sadd.s32 %s42, 1
      %s44 = scalar_select %p41, %s42, %s43
      %p47 = pneg %p41
      %p48 = scmp.eq.s32.totalorder %s18, 1
      %p49 = por %p47, %p48
      %p50 = scmp.ne.s32.totalorder %s42, %s45
      %p51 = scmp.eq.s32.totalorder %s18, 0
      %p52 = por %p50, %p51
      %p53 = scmp.ne.s32.totalorder %s42, %s45
      %p54 = scmp.eq.s32.totalorder %s23, 1
      %p55 = por %p53, %p54
      %p56 = scmp.ne.s32.totalorder %s45, %s46
      %p57 = scmp.eq.s32.totalorder %s23, 0
      %p58 = por %p56, %p57
      %p59 = scmp.ne.s32.totalorder %s45, %s46
      %p60 = scmp.eq.s32.totalorder %s24, 1
      %p61 = por %p59, %p60
      %p63 = scmp.ne.s32.totalorder %s46, %s62
      %p64 = scmp.eq.s32.totalorder %s24, 0
      %p65 = por %p63, %p64
      %s66 = ssub.s32 %s25, %s37
      %s67 = ssub.s32 %s26, %s33
      %s68 = sor.u32 %s66, %s67
      %p69 = scmp.eq.s32.totalorder %s68, 0
      %s71 = sadd.s32 %s70, 1
      %s72 = scalar_select %p69, %s70, %s71
      %p75 = pneg %p69
      %p76 = scmp.eq.s32.totalorder %s18, 1
      %p77 = por %p75, %p76
      %p78 = scmp.ne.s32.totalorder %s70, %s73
      %p79 = scmp.eq.s32.totalorder %s18, 0
      %p80 = por %p78, %p79
      %p81 = scmp.ne.s32.totalorder %s70, %s73
      %p82 = scmp.eq.s32.totalorder %s23, 1
      %p83 = por %p81, %p82
      %p84 = scmp.ne.s32.totalorder %s73, %s74
      %p85 = scmp.eq.s32.totalorder %s23, 0
      %p86 = por %p84, %p85
      %p87 = scmp.ne.s32.totalorder %s73, %s74
      %p88 = scmp.eq.s32.totalorder %s24, 1
      %p89 = por %p87, %p88
      %p91 = scmp.ne.s32.totalorder %s74, %s90
      %p92 = scmp.eq.s32.totalorder %s24, 0
      %p93 = por %p91, %p92
      %s94 = ssub.s32 %s25, %s37
      %s95 = ssub.s32 %s26, %s33
      %s96 = sor.u32 %s94, %s95
      %p97 = scmp.eq.s32.totalorder %s96, 0
      %s99 = sadd.s32 %s98, 1
      %s100 = scalar_select %p97, %s98, %s99
      %p103 = pneg %p97
      %p104 = scmp.eq.s32.totalorder %s18, 1
      %p105 = por %p103, %p104
      %p106 = scmp.ne.s32.totalorder %s98, %s101
      %p107 = scmp.eq.s32.totalorder %s18, 0
      %p108 = por %p106, %p107
      %p109 = scmp.ne.s32.totalorder %s98, %s101
      %p110 = scmp.eq.s32.totalorder %s23, 1
      %p111 = por %p109, %p110
      %p112 = scmp.ne.s32.totalorder %s101, %s102
      %p113 = scmp.eq.s32.totalorder %s23, 0
      %p114 = por %p112, %p113
      %p115 = scmp.ne.s32.totalorder %s101, %s102
      %p116 = scmp.eq.s32.totalorder %s24, 1
      %p117 = por %p115, %p116
      %p119 = scmp.ne.s32.totalorder %s102, %s118
      %p120 = scmp.eq.s32.totalorder %s24, 0
      %p121 = por %p119, %p120
      %p122 = scmp.le.s32.totalorder 1, %s18
      %p123 = scmp.lt.s32.totalorder %s18, 3
      %p124 = pnand %p122, %p123
      %p125 = pneg %p124
      // Predicated region
      $region9: #{tpu_custom_call.1} parent=5 // pred_check
        _
      $region10: #{tpu_custom_call.1} parent=5 // pred_check_branch
        %127 = sbr.rel (%p124) target = $region12
      $region11: #{tpu_custom_call.1} parent=5 // pred_region
        %s128 = ssub.s32 %s18, 1
      $region12: #{tpu_custom_call.1} parent=5 // pred_fallthru
        _
      %p129 = scmp.lt.s32.totalorder %s18, 2
      // Predicated region
      $region13: #{tpu_custom_call.1} parent=5 // pred_check
        %p130 = pneg %p129
      $region14: #{tpu_custom_call.1} parent=5 // pred_check_branch
        %132 = sbr.rel (%p130) target = $region16
      $region15: #{tpu_custom_call.1} parent=5 // pred_region
        // Predicated region
        $region17: #{tpu_custom_call.1} parent=15 // pred_check
          %p133 = pneg %p52
        $region18: #{tpu_custom_call.1} parent=15 // pred_check_branch
          %135 = sbr.rel (%p133) target = $region20
        $region19: #{tpu_custom_call.1} parent=15 // pred_region
          %s136 = sand.u32 %s42, 1
          %s137 = scalar_lea.sflag [#allocation3], %s136
          %s138 = sand.u32 %s42, 1
          %s139 = smul.addr %s138, 4
          %s140 = scalar_lea.vmem [#allocation2], %s139
          %s142 = ssub.s32 64, 64
          %143 = vsyncadd %s137, %s142
          %s144 = sadd.s32 %s26, %s25
          %s145 = smul.addr %s144, 64
          %s146 = scalar_lea.hbm %s0, %s145
          %s148 = sshll.u32 %s140, 4
          %s149 = int_to_ptr.vmem [resolvable:$true] %s148
          %151 = dma.hbm_to_vmem [thread:$0]  %s146, 64, %s149, %s137
        $region20: #{tpu_custom_call.1} parent=15 // pred_fallthru
          _
      $region16: #{tpu_custom_call.1} parent=5 // pred_fallthru
        _
      %p152 = scmp.le.s32.totalorder 1, %s18
      %p153 = scmp.lt.s32.totalorder %s18, 3
      %p154 = pnand %p152, %p153
      %p155 = pneg %p154
      // Predicated region
      $region21: #{tpu_custom_call.1} parent=5 // pred_check
        _
      $region22: #{tpu_custom_call.1} parent=5 // pred_check_branch
        %157 = sbr.rel (%p154) target = $region24
      $region23: #{tpu_custom_call.1} parent=5 // pred_region
        %s158 = ssub.s32 %s18, 1
        %s159 = sand.u32 %s45, 1
        %s160 = scalar_lea.sflag [#allocation3], %s159
        %s161 = sand.u32 %s45, 1
        %s162 = smul.addr %s161, 4
        %s163 = scalar_lea.vmem [#allocation2], %s162
        // Predicated region
        $region25: #{tpu_custom_call.1} parent=23 // pred_check
          %p164 = pneg %p58
        $region26: #{tpu_custom_call.1} parent=23 // pred_check_branch
          %166 = sbr.rel (%p164) target = $region28
        $region27: #{tpu_custom_call.1} parent=23 // pred_region
          %167 = dma.done %s160, 64
        $region28: #{tpu_custom_call.1} parent=23 // pred_fallthru
          _
        %s168 = sand.u32 %s45, 1
        %s169 = scalar_lea.sflag [#allocation3], %s168
        %s170 = sand.u32 %s45, 1
        %s171 = smul.addr %s170, 4
        %s172 = scalar_lea.vmem [#allocation2], %s171
        %p173 = pneg %p58
        %p174 = pneg %p55
        %p175 = pneg %p86
        %p176 = pneg %p83
        %s177 = sand.u32 %s73, 1
        %s178 = scalar_lea.sflag [#allocation4], %s177
        %s179 = sand.u32 %s73, 1
        %s180 = smul.addr %s179, 4
        %s181 = scalar_lea.vmem [#allocation5], %s180
        %p182 = pneg %p114
        %p183 = pneg %p111
        %s184 = sand.u32 %s101, 1
        %s185 = scalar_lea.sflag [#allocation7], %s184
        %s186 = sand.u32 %s101, 1
        %s187 = smul.addr %s186, 4
        %s188 = scalar_lea.vmem [#allocation6], %s187
        %v189 = vld [vmem:[%s163] sm:$0xf]
        %vm190 = vcmask 257024
        %191 = vst.msk [vmem:[%s181] sm:$0xf] %vm190, %v189
        %v192 = vld [vmem:[%s163] sm:$0xf]
        %194 = vrot.lane.b32.xlu0 %v192, 96
        %v195 = vpop.permute.xlu0 %194
        %197 = vst.msk [vmem:[%s188] sm:$0xf] %vm190, %v195
        %s198 = sand.u32 %s73, 1
        %s199 = scalar_lea.sflag [#allocation4], %s198
        %s200 = sand.u32 %s73, 1
        %s201 = smul.addr %s200, 4
        %s202 = scalar_lea.vmem [#allocation5], %s201
        %s203 = sand.u32 %s101, 1
        %s204 = scalar_lea.sflag [#allocation7], %s203
        %s205 = sand.u32 %s101, 1
        %s206 = smul.addr %s205, 4
        %s207 = scalar_lea.vmem [#allocation6], %s206
        // Predicated region
        $region29: #{tpu_custom_call.1} parent=23 // pred_check
          %p208 = pneg %p83
        $region30: #{tpu_custom_call.1} parent=23 // pred_check_branch
          %210 = sbr.rel (%p208) target = $region32
        $region31: #{tpu_custom_call.1} parent=23 // pred_region
          %s212 = ssub.s32 64, 64
          %213 = vsyncadd %s199, %s212
          %s214 = sadd.s32 %s28, %s27
          %s215 = smul.addr %s214, 64
          %s216 = scalar_lea.hbm %s1, %s215
          %s218 = sshll.u32 %s202, 4
          %s219 = int_to_ptr.vmem [resolvable:$true] %s218
          %221 = dma.vmem_to_hbm [thread:$0]  %s219, 64, %s216, %s199
        $region32: #{tpu_custom_call.1} parent=23 // pred_fallthru
          _
        // Predicated region
        $region33: #{tpu_custom_call.1} parent=23 // pred_check
          %p222 = pneg %p111
        $region34: #{tpu_custom_call.1} parent=23 // pred_check_branch
          %224 = sbr.rel (%p222) target = $region36
        $region35: #{tpu_custom_call.1} parent=23 // pred_region
          %s226 = ssub.s32 64, 64
          %227 = vsyncadd %s204, %s226
          %s228 = sadd.s32 %s28, %s27
          %s229 = smul.addr %s228, 64
          %s230 = scalar_lea.hbm %s2, %s229
          %s232 = sshll.u32 %s207, 4
          %s233 = int_to_ptr.vmem [resolvable:$true] %s232
          %235 = dma.vmem_to_hbm [thread:$0]  %s233, 64, %s230, %s204
        $region36: #{tpu_custom_call.1} parent=23 // pred_fallthru
          _
      $region24: #{tpu_custom_call.1} parent=5 // pred_fallthru
        _
      %p236 = scmp.le.s32.totalorder 2, %s18
      // Predicated region
      $region37: #{tpu_custom_call.1} parent=5 // pred_check
        %p237 = pneg %p236
      $region38: #{tpu_custom_call.1} parent=5 // pred_check_branch
        %239 = sbr.rel (%p237) target = $region40
      $region39: #{tpu_custom_call.1} parent=5 // pred_region
        %s240 = ssub.s32 %s18, 2
        // Predicated region
        $region41: #{tpu_custom_call.1} parent=39 // pred_check
          %p241 = pneg %p89
        $region42: #{tpu_custom_call.1} parent=39 // pred_check_branch
          %243 = sbr.rel (%p241) target = $region44
        $region43: #{tpu_custom_call.1} parent=39 // pred_region
          %s244 = sand.u32 %s74, 1
          %s245 = scalar_lea.sflag [#allocation4], %s244
          %s246 = sand.u32 %s74, 1
          %s247 = smul.addr %s246, 4
          %s248 = scalar_lea.vmem [#allocation5], %s247
          %249 = dma.done %s245, 64
        $region44: #{tpu_custom_call.1} parent=39 // pred_fallthru
          _
        // Predicated region
        $region45: #{tpu_custom_call.1} parent=39 // pred_check
          %p250 = pneg %p117
        $region46: #{tpu_custom_call.1} parent=39 // pred_check_branch
          %252 = sbr.rel (%p250) target = $region48
        $region47: #{tpu_custom_call.1} parent=39 // pred_region
          %s253 = sand.u32 %s102, 1
          %s254 = scalar_lea.sflag [#allocation7], %s253
          %s255 = sand.u32 %s102, 1
          %s256 = smul.addr %s255, 4
          %s257 = scalar_lea.vmem [#allocation6], %s256
          %258 = dma.done %s254, 64
        $region48: #{tpu_custom_call.1} parent=39 // pred_fallthru
          _
      $region40: #{tpu_custom_call.1} parent=5 // pred_fallthru
        _
    $region6: #{tpu_custom_call.1} parent=1 // loop_footer
      %s22 = sadd.s32 1, %s18
    $region7: #{tpu_custom_call.1} parent=1 // loop_footer_branch
      %17 = sbr.rel target = $region3
    $region8: #{tpu_custom_call.1} parent=1 // loop_exit
      _
    %259 = vsyncpa [#allocation3], 1
    %s260 = scalar_lea.sflag [#allocation3], 1
    %261 = vsyncpa %s260, 1
    %262 = vsyncpa [#allocation4], 1
    %s263 = scalar_lea.sflag [#allocation4], 1
    %264 = vsyncpa %s263, 1
    %265 = vsyncpa [#allocation7], 1
    %s266 = scalar_lea.sflag [#allocation7], 1
    %267 = vsyncpa %s266, 1

</llo_original>
